<compile_context>
chip_gen: v7x
topology: tpu7x:2x2x1
jax: 0.10.0
libtpu: 0.0.40
codegen_flags: <defaults>
</compile_context>

<pallas_src>
import functools

import jax
import jax.numpy as jnp
from jax.experimental import pallas as pl
from jax.experimental.pallas import tpu as pltpu

_LANE = 128
_MAX_TM = 1024
_MIN_GRID_STEPS = 4


def _round_up(x, m):
    return ((x + m - 1) // m) * m


@functools.lru_cache(maxsize=None)
def _vmem_limits():
    """(tile-sizing budget, vmem_limit_bytes) sized per TPU generation."""
    phys = 64 * 1024 * 1024                       # conservative default (v7x)
    try:
        info = pltpu.get_tpu_info()
        phys = int(getattr(info, "vmem_capacity_bytes", phys)) or phys
    except Exception:
        pass
    limit = max(24 * 1024 * 1024, min(int(phys * 0.45), 100 * 1024 * 1024))
    budget = int(limit * 0.85)                    # headroom within the limit
    return budget, limit


def _pick_row_tile(M128, Hp, Lp, x_bytes, w_bytes, out_bytes, budget):
    """Largest 128-multiple row tile whose full live set fits the VMEM budget.

    Live set per grid step:
      * resident weights/biases, single-buffered (pl.Buffered(1))
      * x tile + out tile, double-buffered by the pipeline
      * in-kernel intermediates: bf16 copy of x, f32 h, bf16 copy of h, f32 out
    """
    weight_bytes = (Hp * Hp + Hp * Lp) * w_bytes + (Hp + Lp) * 4
    per_row = (2 * (Hp * x_bytes + Lp * out_bytes)       # double-buffered I/O tiles
               + Hp * (w_bytes + 4 + w_bytes)            # x cast + h(f32) + h cast
               + Lp * 4)                                  # f32 logits before store cast
    if weight_bytes + _LANE * per_row > budget:
        # TODO(synk): add a K-tiled grid axis for hidden sizes whose resident
        # weights do not fit VMEM; not needed for typical classifier heads.
        raise ValueError(
            f"Resident weights ({weight_bytes} B) do not fit the VMEM budget "
            f"({budget} B) for hidden={Hp}, labels_padded={Lp}.")
    tm = (budget - weight_bytes) // per_row
    tm = max(_LANE, min(_MAX_TM, (tm // _LANE) * _LANE))
    # Keep >= _MIN_GRID_STEPS row tiles when M is large enough (v7x megacore
    # sharding + DMA/compute overlap); never exceed the 128-padded M.
    tm = min(tm, max(_LANE, _round_up(pl.cdiv(M128, _MIN_GRID_STEPS), _LANE)))
    tm = min(tm, M128)
    return tm


def _head_kernel(x_ref, w1_ref, b1_ref, w2_ref, b2_ref, o_ref):
    # x_ref:  (TM, Hp)  input rows in their original dtype (cast to bf16 here)
    # w1_ref: (Hp, Hp)  dense weight, (in, out) layout, compute dtype
    # b1_ref: (1, Hp)   dense bias, f32
    # w2_ref: (Hp, Lp)  out_proj weight, (in, out) layout, zero-padded
    # b2_ref: (1, Lp)   out_proj bias, zero-padded, f32
    # o_ref:  (TM, Lp)  logits in features.dtype (lane-dense)
    #
    # dropout (eval mode) == identity
    x = x_ref[...].astype(w1_ref.dtype)
    h = jnp.dot(x, w1_ref[...], preferred_element_type=jnp.float32) + b1_ref[...]
    h = jnp.tanh(h)                                    # f32 bias add + tanh (EUP)
    # dropout (eval mode) == identity
    out = jnp.dot(h.astype(w2_ref.dtype), w2_ref[...],
                  preferred_element_type=jnp.float32) + b2_ref[...]
    o_ref[...] = out.astype(o_ref.dtype)
    # TODO(synk): training-mode dropout would need pltpu.prng_seed /
    # pltpu.prng_random_bits masks; the inference path treats it as identity.


@functools.partial(jax.jit, static_argnames=("compute_dtype",))
def line_classification_head(features, w_dense, b_dense, w_out, b_out,
                             *, compute_dtype=jnp.bfloat16):
    """features: (B, S, H). Weights in PyTorch (out_features, in_features) layout."""
    B, S, H = features.shape
    L = w_out.shape[0]
    M = B * S

    Hp = _round_up(H, _LANE)        # lane-dense contraction depth
    Lp = _round_up(L, _LANE)        # lane-dense output width
    M128 = _round_up(M, _LANE)

    x_bytes = jnp.dtype(features.dtype).itemsize
    w_bytes = jnp.dtype(compute_dtype).itemsize
    out_bytes = x_bytes
    budget, vmem_limit = _vmem_limits()
    TM = _pick_row_tile(M128, Hp, Lp, x_bytes, w_bytes, out_bytes, budget)
    Mp = _round_up(M128, TM)        # padding waste bounded by < TM rows
    grid = (Mp // TM,)

    # Input rows stay in their original dtype (in-kernel cast); zero-pad the
    # row remainder and the H lane remainder (padded rows are discarded).
    x2d = features.reshape(M, H)
    if Mp > M or Hp > H:
        x2d = jnp.pad(x2d, ((0, Mp - M), (0, Hp - H)))

    # One-time wrapper transpose to (in, out) layout + zero padding, so the
    # kernel runs a canonical (M,K)x(K,N) MXU contraction every grid step.
    # Padded W rows/cols and bias lanes are exactly zero => padded logits are 0.
    w1 = jnp.pad(w_dense.T, ((0, Hp - H), (0, Hp - H))).astype(compute_dtype)  # (Hp, Hp)
    b1 = jnp.pad(b_dense, (0, Hp - H)).reshape(1, Hp).astype(jnp.float32)
    w2 = jnp.pad(w_out.T, ((0, Hp - H), (0, Lp - L))).astype(compute_dtype)    # (Hp, Lp)
    b2 = jnp.pad(b_out, (0, Lp - L)).reshape(1, Lp).astype(jnp.float32)

    # Constant-index inputs: single-buffered (double-buffering buys nothing).
    resident = functools.partial(pl.BlockSpec, pipeline_mode=pl.Buffered(1))

    out2d = pl.pallas_call(
        _head_kernel,
        out_shape=jax.ShapeDtypeStruct((Mp, Lp), features.dtype),
        grid=grid,
        in_specs=[
            pl.BlockSpec((TM, Hp), lambda i: (i, 0)),     # streamed row tiles
            resident((Hp, Hp), lambda i: (0, 0)),         # VMEM-resident weights
            resident((1, Hp), lambda i: (0, 0)),
            resident((Hp, Lp), lambda i: (0, 0)),
            resident((1, Lp), lambda i: (0, 0)),
        ],
        out_specs=pl.BlockSpec((TM, Lp), lambda i: (i, 0)),
        compiler_params=pltpu.CompilerParams(
            dimension_semantics=("parallel",),
            vmem_limit_bytes=vmem_limit,
        ),
    )(x2d, w1, b1, w2, b2)

    return out2d[:M, :L].reshape(B, S, L)


if __name__ == "__main__":
    # Config-like small shapes: hidden_size=32, num_labels=4, batch=2, seq=8.
    B, S, H, L = 2, 8, 32, 4

    key = jax.random.PRNGKey(0)
    k_x, k_w1, k_b1, k_w2, k_b2 = jax.random.split(key, 5)

    features = jax.random.normal(k_x, (B, S, H), dtype=jnp.float32)
    # Deterministic parameter init (PyTorch Linear convention: weight (out, in)).
    w_dense = jax.random.normal(k_w1, (H, H), dtype=jnp.float32) * 0.05
    b_dense = jax.random.normal(k_b1, (H,), dtype=jnp.float32) * 0.05
    w_out = jax.random.normal(k_w2, (L, H), dtype=jnp.float32) * 0.05
    b_out = jax.random.normal(k_b2, (H,), dtype=jnp.float32)[:L] * 0.05

    logits = line_classification_head(features, w_dense, b_dense, w_out, b_out)
    jax.block_until_ready(logits)

    # Reference in plain JAX (same math, f32). bf16 MXU inputs with f32
    # accumulation keep the classification logits within a loose tolerance.
    ref_f32 = jnp.tanh(features @ w_dense.T + b_dense) @ w_out.T + b_out
    assert logits.shape == (B, S, L)
    assert logits.dtype == features.dtype
    assert jnp.allclose(logits, ref_f32, atol=2e-2, rtol=2e-2), (
        float(jnp.max(jnp.abs(logits - ref_f32))))

    # Tight check against a bf16-cast reference (mirrors the kernel's dtypes).
    xb = features.astype(jnp.bfloat16).astype(jnp.float32)
    w1b = w_dense.astype(jnp.bfloat16).astype(jnp.float32)
    w2b = w_out.astype(jnp.bfloat16).astype(jnp.float32)
    hb = jnp.tanh(xb @ w1b.T + b_dense).astype(jnp.bfloat16).astype(jnp.float32)
    ref_bf16 = hb @ w2b.T + b_out
    assert jnp.allclose(logits, ref_bf16, atol=5e-3, rtol=5e-3), (
        float(jnp.max(jnp.abs(logits - ref_bf16))))

    print("KERNEL_OK")
</pallas_src>

<mosaic_0001>
module attributes {stable_mosaic.version = 11 : i64} {
  func.func @_head_kernel(%arg0: i32, %arg1: memref<128x128xf32, #tpu.memory_space<vmem>>, %arg2: memref<128x128xbf16, #tpu.memory_space<vmem>>, %arg3: memref<1x128xf32, #tpu.memory_space<vmem>>, %arg4: memref<128x128xbf16, #tpu.memory_space<vmem>>, %arg5: memref<1x128xf32, #tpu.memory_space<vmem>>, %arg6: memref<128x128xf32, #tpu.memory_space<vmem>>) attributes {dimension_semantics = [#tpu.dimension_semantics<parallel>], iteration_bounds = array<i64: 1>, scalar_prefetch = 0 : i64, scratch_operands = 0 : i64, tpu.core_type = #tpu.core_type<tc>, window_params = [{transform_indices = @transform_0, window_bounds = array<i64: 128, 128>}, {pipeline_mode = #tpu.pipeline_mode<synchronous>, transform_indices = @transform_1, window_bounds = array<i64: 128, 128>}, {pipeline_mode = #tpu.pipeline_mode<synchronous>, transform_indices = @transform_2, window_bounds = array<i64: 1, 128>}, {pipeline_mode = #tpu.pipeline_mode<synchronous>, transform_indices = @transform_3, window_bounds = array<i64: 128, 128>}, {pipeline_mode = #tpu.pipeline_mode<synchronous>, transform_indices = @transform_4, window_bounds = array<i64: 1, 128>}, {transform_indices = @transform_5, window_bounds = array<i64: 128, 128>}]} {
    %c0 = arith.constant 0 : index
    %c0_0 = arith.constant 0 : index
    %0 = vector.load %arg1[%c0, %c0_0] : memref<128x128xf32, #tpu.memory_space<vmem>>, vector<128x128xf32>
    %1 = arith.truncf %0 : vector<128x128xf32> to vector<128x128xbf16>
    %c0_1 = arith.constant 0 : index
    %c0_2 = arith.constant 0 : index
    %2 = vector.load %arg2[%c0_1, %c0_2] : memref<128x128xbf16, #tpu.memory_space<vmem>>, vector<128x128xbf16>
    %cst = arith.constant dense<0.000000e+00> : vector<128x128xf32>
    %3 = tpu.matmul %1, %2, %cst {dimension_numbers = #tpu.dot_dimension_numbers<[1], [0], [0], [1], [0, 0, 1, 1], [], []>} : vector<128x128xbf16>, vector<128x128xbf16>, vector<128x128xf32> -> vector<128x128xf32>
    %c0_3 = arith.constant 0 : index
    %c0_4 = arith.constant 0 : index
    %4 = vector.load %arg3[%c0_3, %c0_4] : memref<1x128xf32, #tpu.memory_space<vmem>>, vector<1x128xf32>
    %5 = vector.broadcast %4 : vector<1x128xf32> to vector<128x128xf32>
    %6 = arith.addf %3, %5 : vector<128x128xf32>
    %7 = math.tanh %6 : vector<128x128xf32>
    %8 = arith.truncf %7 : vector<128x128xf32> to vector<128x128xbf16>
    %c0_5 = arith.constant 0 : index
    %c0_6 = arith.constant 0 : index
    %9 = vector.load %arg4[%c0_5, %c0_6] : memref<128x128xbf16, #tpu.memory_space<vmem>>, vector<128x128xbf16>
    %cst_7 = arith.constant dense<0.000000e+00> : vector<128x128xf32>
    %10 = tpu.matmul %8, %9, %cst_7 {dimension_numbers = #tpu.dot_dimension_numbers<[1], [0], [0], [1], [0, 0, 1, 1], [], []>} : vector<128x128xbf16>, vector<128x128xbf16>, vector<128x128xf32> -> vector<128x128xf32>
    %c0_8 = arith.constant 0 : index
    %c0_9 = arith.constant 0 : index
    %11 = vector.load %arg5[%c0_8, %c0_9] : memref<1x128xf32, #tpu.memory_space<vmem>>, vector<1x128xf32>
    %12 = vector.broadcast %11 : vector<1x128xf32> to vector<128x128xf32>
    %13 = arith.addf %10, %12 : vector<128x128xf32>
    %c0_10 = arith.constant 0 : index
    %c0_11 = arith.constant 0 : index
    %14 = vector.load %arg6[%c0_10, %c0_11] : memref<128x128xf32, #tpu.memory_space<vmem>>, vector<128x128xf32>
    tpu.vector_store %arg6[%c0_10, %c0_11], %13 {strides = array<i32>} : memref<128x128xf32, #tpu.memory_space<vmem>>, vector<128x128xf32>,
    return
  }
  func.func @transform_0(%arg0: i32) -> (i32, i32) {
    %c0_i32 = arith.constant 0 : i32
    %c0_i32_0 = arith.constant 0 : i32
    return %arg0, %c0_i32 : i32, i32
  }
  func.func @transform_1(%arg0: i32) -> (i32, i32) {
    %c0_i32 = arith.constant 0 : i32
    %c0_i32_0 = arith.constant 0 : i32
    %c0_i32_1 = arith.constant 0 : i32
    return %c0_i32, %c0_i32_0 : i32, i32
  }
  func.func @transform_2(%arg0: i32) -> (i32, i32) {
    %c0_i32 = arith.constant 0 : i32
    %c0_i32_0 = arith.constant 0 : i32
    %c0_i32_1 = arith.constant 0 : i32
    return %c0_i32, %c0_i32_0 : i32, i32
  }
  func.func @transform_3(%arg0: i32) -> (i32, i32) {
    %c0_i32 = arith.constant 0 : i32
    %c0_i32_0 = arith.constant 0 : i32
    %c0_i32_1 = arith.constant 0 : i32
    return %c0_i32, %c0_i32_0 : i32, i32
  }
  func.func @transform_4(%arg0: i32) -> (i32, i32) {
    %c0_i32 = arith.constant 0 : i32
    %c0_i32_0 = arith.constant 0 : i32
    %c0_i32_1 = arith.constant 0 : i32
    return %c0_i32, %c0_i32_0 : i32, i32
  }
  func.func @transform_5(%arg0: i32) -> (i32, i32) {
    %c0_i32 = arith.constant 0 : i32
    %c0_i32_0 = arith.constant 0 : i32
    return %arg0, %c0_i32 : i32, i32
  }
}

</mosaic_0001>

<llo_original>
// kernel: line_classification_head.1
$region0: #{line_classification_head.1}
  #allocation0 [shape = 'u32[]', space=smem, size = 0x4, offset = 0x4, fixed_abs, tag = 'smem constant byte address 0x4 - core index']
  #allocation1 [shape = 'u32[144,128]{1,0:T(1,128)}', space=vmem, size = 0x12000, scoped, tag = 'internal scratch']
  %s0 = inlined_call_operand.vmem [shape: f32[128,128], index: 0, kind: input, shape index: {}]
  %s1 = inlined_call_operand.vmem [shape: bf16[128,128], index: 1, kind: input, shape index: {}]
  %s2 = inlined_call_operand.vmem [shape: f32[1,128], index: 2, kind: input, shape index: {}]
  %s3 = inlined_call_operand.vmem [shape: bf16[128,128], index: 3, kind: input, shape index: {}]
  %s4 = inlined_call_operand.vmem [shape: f32[1,128], index: 4, kind: input, shape index: {}]
  %s5 = inlined_call_operand.vmem [shape: f32[128,128], index: 5, kind: output, shape index: {}]
  %s6 = sld [smem:[#allocation0]]
  $region30: #{line_classification_head.1} parent=0
    _
  %s8 = ssub.s32 1, %s6
  %s9 = scalar_select 0, %s8, %s6
  // Predicated region
  $region2: #{line_classification_head.1} parent=0 // pred_check
    _
  $region3: #{line_classification_head.1} parent=0 // pred_check_branch
    %11 = sbr.rel (0) target = $region5
  $region4: #{line_classification_head.1} parent=0 // pred_region
    _
  $region5: #{line_classification_head.1} parent=0 // pred_fallthru
    _
  // Predicated region
  $region6: #{line_classification_head.1} parent=0 // pred_check
    _
  $region7: #{line_classification_head.1} parent=0 // pred_check_branch
    %13 = sbr.rel (0) target = $region9
  $region8: #{line_classification_head.1} parent=0 // pred_region
    _
  $region9: #{line_classification_head.1} parent=0 // pred_fallthru
    _
  // Predicated region
  $region10: #{line_classification_head.1} parent=0 // pred_check
    _
  $region11: #{line_classification_head.1} parent=0 // pred_check_branch
    %15 = sbr.rel (0) target = $region13
  $region12: #{line_classification_head.1} parent=0 // pred_region
    _
  $region13: #{line_classification_head.1} parent=0 // pred_fallthru
    _
  // Predicated region
  $region14: #{line_classification_head.1} parent=0 // pred_check
    _
  $region15: #{line_classification_head.1} parent=0 // pred_check_branch
    %17 = sbr.rel (0) target = $region17
  $region16: #{line_classification_head.1} parent=0 // pred_region
    _
  $region17: #{line_classification_head.1} parent=0 // pred_fallthru
    _
  // Predicated region
  $region18: #{line_classification_head.1} parent=0 // pred_check
    _
  $region19: #{line_classification_head.1} parent=0 // pred_check_branch
    %19 = sbr.rel (0) target = $region21
  $region20: #{line_classification_head.1} parent=0 // pred_region
    _
  $region21: #{line_classification_head.1} parent=0 // pred_fallthru
    _
  %v21 = vld [vmem:[%s0] sm:$0xff]
  %v22 = vld [vmem:[%s0 + $0x8] sm:$0xff]
  %v23 = vld [vmem:[%s0 + $0x10] sm:$0xff]
  %v24 = vld [vmem:[%s0 + $0x18] sm:$0xff]
  %v25 = vld [vmem:[%s0 + $0x20] sm:$0xff]
  %v26 = vld [vmem:[%s0 + $0x28] sm:$0xff]
  %v27 = vld [vmem:[%s0 + $0x30] sm:$0xff]
  %v28 = vld [vmem:[%s0 + $0x38] sm:$0xff]
  %v29 = vld [vmem:[%s0 + $0x40] sm:$0xff]
  %v30 = vld [vmem:[%s0 + $0x48] sm:$0xff]
  %v31 = vld [vmem:[%s0 + $0x50] sm:$0xff]
  %v32 = vld [vmem:[%s0 + $0x58] sm:$0xff]
  %v33 = vld [vmem:[%s0 + $0x60] sm:$0xff]
  %v34 = vld [vmem:[%s0 + $0x68] sm:$0xff]
  %v35 = vld [vmem:[%s0 + $0x70] sm:$0xff]
  %v36 = vld [vmem:[%s0 + $0x78] sm:$0xff]
  %v37 = vpack.c.bf16 %v22, %v21
  %v38 = vpack.c.bf16 %v24, %v23
  %v39 = vpack.c.bf16 %v26, %v25
  %v40 = vpack.c.bf16 %v28, %v27
  %v41 = vpack.c.bf16 %v30, %v29
  %v42 = vpack.c.bf16 %v32, %v31
  %v43 = vpack.c.bf16 %v34, %v33
  %v44 = vpack.c.bf16 %v36, %v35
  %v45 = vld [vmem:[%s1] sm:$0xf]
  %v46 = vld [vmem:[%s1 + $0x4] sm:$0xf]
  %v47 = vld [vmem:[%s1 + $0x8] sm:$0xf]
  %v48 = vld [vmem:[%s1 + $0xc] sm:$0xf]
  %v49 = vld [vmem:[%s1 + $0x10] sm:$0xf]
  %v50 = vld [vmem:[%s1 + $0x14] sm:$0xf]
  %v51 = vld [vmem:[%s1 + $0x18] sm:$0xf]
  %v52 = vld [vmem:[%s1 + $0x1c] sm:$0xf]
  %v53 = vld [vmem:[%s1 + $0x20] sm:$0xf]
  %v54 = vld [vmem:[%s1 + $0x24] sm:$0xf]
  %v55 = vld [vmem:[%s1 + $0x28] sm:$0xf]
  %v56 = vld [vmem:[%s1 + $0x2c] sm:$0xf]
  %v57 = vld [vmem:[%s1 + $0x30] sm:$0xf]
  %v58 = vld [vmem:[%s1 + $0x34] sm:$0xf]
  %v59 = vld [vmem:[%s1 + $0x38] sm:$0xf]
  %v60 = vld [vmem:[%s1 + $0x3c] sm:$0xf]
  %v61 = vld [vmem:[%s2] sm:$0x1]
  %v63 = vlaneseq
  %v64 = vshrl.u32 %v63, 7
  %v65 = vsub.s32 0, %v64
  %v66 = vrot.slane %v61, %v65
  %v84 = vunpack.c.l.b16 %v45
  %v85 = vunpack.c.l.b16 %v46
  %v86 = vunpack.c.l.b16 %v47
  %v87 = vunpack.c.l.b16 %v48
  %v88 = vunpack.c.l.b16 %v49
  %v89 = vunpack.c.l.b16 %v50
  %v90 = vunpack.c.l.b16 %v51
  %v91 = vunpack.c.l.b16 %v52
  %v92 = vunpack.c.l.b16 %v53
  %v93 = vunpack.c.l.b16 %v54
  %v94 = vunpack.c.l.b16 %v55
  %v95 = vunpack.c.l.b16 %v56
  %v96 = vunpack.c.l.b16 %v57
  %v97 = vunpack.c.l.b16 %v58
  %v98 = vunpack.c.l.b16 %v59
  %v99 = vunpack.c.l.b16 %v60
  %v100 = vpack.c.b16 %v85, %v84
  %v101 = vpack.c.b16 %v87, %v86
  %v102 = vpack.c.b16 %v89, %v88
  %v103 = vpack.c.b16 %v91, %v90
  %v104 = vpack.c.b16 %v93, %v92
  %v105 = vpack.c.b16 %v95, %v94
  %v106 = vpack.c.b16 %v97, %v96
  %v107 = vpack.c.b16 %v99, %v98
  %116 = vmatprep.subr.bf16.mxu0 0
  %117 = vmatpush1.bf16.msra.mxu0 %v100
  %118 = vmatprep.subr.bf16.mxu0 0
  %119 = vmatpush1.bf16.msra.mxu0 %v101
  %120 = vmatprep.subr.bf16.mxu0 0
  %121 = vmatpush1.bf16.msra.mxu0 %v102
  %122 = vmatprep.subr.bf16.mxu0 0
  %123 = vmatpush1.bf16.msra.mxu0 %v103
  %124 = vmatprep.subr.bf16.mxu0 0
  %125 = vmatpush1.bf16.msra.mxu0 %v104
  %126 = vmatprep.subr.bf16.mxu0 0
  %127 = vmatpush1.bf16.msra.mxu0 %v105
  %128 = vmatprep.subr.bf16.mxu0 0
  %129 = vmatpush1.bf16.msra.mxu0 %v106
  %130 = vmatprep.subr.bf16.mxu0 0
  %131 = vmatpush1.bf16.msra.mxu0 %v107
  %132 = vmatprep.subr.bf16.mxu0 0
  %133 = vmatpush1.bf16.msra.mxu0 0
  %134 = vmatprep.subr.bf16.mxu0 0
  %135 = vmatpush1.bf16.msra.mxu0 0
  %136 = vmatprep.subr.bf16.mxu0 0
  %137 = vmatpush1.bf16.msra.mxu0 0
  %138 = vmatprep.subr.bf16.mxu0 0
  %139 = vmatpush1.bf16.msra.mxu0 0
  %140 = vmatprep.subr.bf16.mxu0 0
  %141 = vmatpush1.bf16.msra.mxu0 0
  %142 = vmatprep.subr.bf16.mxu0 0
  %143 = vmatpush1.bf16.msra.mxu0 0
  %144 = vmatprep.subr.bf16.mxu0 0
  %145 = vmatpush1.bf16.msra.mxu0 0
  %146 = vmatprep.subr.bf16.mxu0 0
  %147 = vmatpush1.bf16.msra.mxu0 0
  %148 = vmatprep.mubr.bf16.mxu0 0
  %149 = vmatmul.mubr.bf16.gmra.mrb[0].mxu0 %v37
  %v150 = vpop.f32.mrb[0].mxu0
  %v151 = vadd.f32 %v66, %v150
  %v152 = vpop.f32.mrb[0].mxu0
  %v153 = vpop.f32.mrb[0].mxu0
  %v154 = vadd.f32 %v66, %v153
  %v155 = vpop.f32.mrb[0].mxu0
  %156 = vmatprep.mubr.bf16.mxu0 0
  %157 = vmatmul.mubr.bf16.gmra.mrb[0].mxu0 %v38
  %v158 = vpop.f32.mrb[0].mxu0
  %v159 = vadd.f32 %v66, %v158
  %v160 = vpop.f32.mrb[0].mxu0
  %v161 = vpop.f32.mrb[0].mxu0
  %v162 = vadd.f32 %v66, %v161
  %v163 = vpop.f32.mrb[0].mxu0
  %164 = vmatprep.mubr.bf16.mxu0 0
  %165 = vmatmul.mubr.bf16.gmra.mrb[0].mxu0 %v39
  %v166 = vpop.f32.mrb[0].mxu0
  %v167 = vadd.f32 %v66, %v166
  %v168 = vpop.f32.mrb[0].mxu0
  %v169 = vpop.f32.mrb[0].mxu0
  %v170 = vadd.f32 %v66, %v169
  %v171 = vpop.f32.mrb[0].mxu0
  %172 = vmatprep.mubr.bf16.mxu0 0
  %173 = vmatmul.mubr.bf16.gmra.mrb[0].mxu0 %v40
  %v174 = vpop.f32.mrb[0].mxu0
  %v175 = vadd.f32 %v66, %v174
  %v176 = vpop.f32.mrb[0].mxu0
  %v177 = vpop.f32.mrb[0].mxu0
  %v178 = vadd.f32 %v66, %v177
  %v179 = vpop.f32.mrb[0].mxu0
  %180 = vmatprep.mubr.bf16.mxu0 0
  %181 = vmatmul.mubr.bf16.gmra.mrb[0].mxu0 %v41
  %v182 = vpop.f32.mrb[0].mxu0
  %v183 = vadd.f32 %v66, %v182
  %v184 = vpop.f32.mrb[0].mxu0
  %v185 = vpop.f32.mrb[0].mxu0
  %v186 = vadd.f32 %v66, %v185
  %v187 = vpop.f32.mrb[0].mxu0
  %188 = vmatprep.mubr.bf16.mxu0 0
  %189 = vmatmul.mubr.bf16.gmra.mrb[0].mxu0 %v42
  %v190 = vpop.f32.mrb[0].mxu0
  %v191 = vadd.f32 %v66, %v190
  %v192 = vpop.f32.mrb[0].mxu0
  %v193 = vpop.f32.mrb[0].mxu0
  %v194 = vadd.f32 %v66, %v193
  %v195 = vpop.f32.mrb[0].mxu0
  %196 = vmatprep.mubr.bf16.mxu0 0
  %197 = vmatmul.mubr.bf16.gmra.mrb[0].mxu0 %v43
  %v198 = vpop.f32.mrb[0].mxu0
  %v199 = vadd.f32 %v66, %v198
  %v200 = vpop.f32.mrb[0].mxu0
  %v201 = vpop.f32.mrb[0].mxu0
  %v202 = vadd.f32 %v66, %v201
  %v203 = vpop.f32.mrb[0].mxu0
  %204 = vmatprep.mubr.bf16.mxu0 0
  %205 = vmatmul.mubr.bf16.gmra.mrb[0].mxu0 %v44
  %v206 = vpop.f32.mrb[0].mxu0
  %v207 = vadd.f32 %v66, %v206
  %v208 = vpop.f32.mrb[0].mxu0
  %v209 = vpop.f32.mrb[0].mxu0
  %v210 = vadd.f32 %v66, %v209
  %v211 = vpop.f32.mrb[0].mxu0
  %212 = vdwg.mxu0
  %v213 = vtanh.pop %v151
  %v214 = vtanh.pop %v154
  %v215 = vtanh.pop %v159
  %v216 = vtanh.pop %v162
  %v217 = vtanh.pop %v167
  %v218 = vtanh.pop %v170
  %v219 = vtanh.pop %v175
  %v220 = vtanh.pop %v178
  %v221 = vtanh.pop %v183
  %v222 = vtanh.pop %v186
  %v223 = vtanh.pop %v191
  %v224 = vtanh.pop %v194
  %v225 = vtanh.pop %v199
  %v226 = vtanh.pop %v202
  %v227 = vtanh.pop %v207
  %v228 = vtanh.pop %v210
  %v229 = vpack.c.bf16 %v214, %v213
  %v230 = vpack.c.bf16 %v216, %v215
  %v231 = vpack.c.bf16 %v218, %v217
  %v232 = vpack.c.bf16 %v220, %v219
  %v233 = vpack.c.bf16 %v222, %v221
  %v234 = vpack.c.bf16 %v224, %v223
  %v235 = vpack.c.bf16 %v226, %v225
  %v236 = vpack.c.bf16 %v228, %v227
  %v237 = vld [vmem:[%s3] sm:$0xf]
  %v238 = vld [vmem:[%s3 + $0x4] sm:$0xf]
  %v239 = vld [vmem:[%s3 + $0x8] sm:$0xf]
  %v240 = vld [vmem:[%s3 + $0xc] sm:$0xf]
  %v241 = vld [vmem:[%s3 + $0x10] sm:$0xf]
  %v242 = vld [vmem:[%s3 + $0x14] sm:$0xf]
  %v243 = vld [vmem:[%s3 + $0x18] sm:$0xf]
  %v244 = vld [vmem:[%s3 + $0x1c] sm:$0xf]
  %v245 = vld [vmem:[%s3 + $0x20] sm:$0xf]
  %v246 = vld [vmem:[%s3 + $0x24] sm:$0xf]
  %v247 = vld [vmem:[%s3 + $0x28] sm:$0xf]
  %v248 = vld [vmem:[%s3 + $0x2c] sm:$0xf]
  %v249 = vld [vmem:[%s3 + $0x30] sm:$0xf]
  %v250 = vld [vmem:[%s3 + $0x34] sm:$0xf]
  %v251 = vld [vmem:[%s3 + $0x38] sm:$0xf]
  %v252 = vld [vmem:[%s3 + $0x3c] sm:$0xf]
  %v253 = vld [vmem:[%s4] sm:$0x1]
  %v255 = vlaneseq
  %v256 = vshrl.u32 %v255, 7
  %v257 = vsub.s32 0, %v256
  %v258 = vrot.slane %v253, %v257
  %v276 = vunpack.c.l.b16 %v237
  %v277 = vunpack.c.l.b16 %v238
  %v278 = vunpack.c.l.b16 %v239
  %v279 = vunpack.c.l.b16 %v240
  %v280 = vunpack.c.l.b16 %v241
  %v281 = vunpack.c.l.b16 %v242
  %v282 = vunpack.c.l.b16 %v243
  %v283 = vunpack.c.l.b16 %v244
  %v284 = vunpack.c.l.b16 %v245
  %v285 = vunpack.c.l.b16 %v246
  %v286 = vunpack.c.l.b16 %v247
  %v287 = vunpack.c.l.b16 %v248
  %v288 = vunpack.c.l.b16 %v249
  %v289 = vunpack.c.l.b16 %v250
  %v290 = vunpack.c.l.b16 %v251
  %v291 = vunpack.c.l.b16 %v252
  %v292 = vpack.c.b16 %v277, %v276
  %v293 = vpack.c.b16 %v279, %v278
  %v294 = vpack.c.b16 %v281, %v280
  %v295 = vpack.c.b16 %v283, %v282
  %v296 = vpack.c.b16 %v285, %v284
  %v297 = vpack.c.b16 %v287, %v286
  %v298 = vpack.c.b16 %v289, %v288
  %v299 = vpack.c.b16 %v291, %v290
  %308 = vmatprep.subr.bf16.mxu0 0
  %309 = vmatpush1.bf16.msra.mxu0 %v292
  %310 = vmatprep.subr.bf16.mxu0 0
  %311 = vmatpush1.bf16.msra.mxu0 %v293
  %312 = vmatprep.subr.bf16.mxu0 0
  %313 = vmatpush1.bf16.msra.mxu0 %v294
  %314 = vmatprep.subr.bf16.mxu0 0
  %315 = vmatpush1.bf16.msra.mxu0 %v295
  %316 = vmatprep.subr.bf16.mxu0 0
  %317 = vmatpush1.bf16.msra.mxu0 %v296
  %318 = vmatprep.subr.bf16.mxu0 0
  %319 = vmatpush1.bf16.msra.mxu0 %v297
  %320 = vmatprep.subr.bf16.mxu0 0
  %321 = vmatpush1.bf16.msra.mxu0 %v298
  %322 = vmatprep.subr.bf16.mxu0 0
  %323 = vmatpush1.bf16.msra.mxu0 %v299
  %324 = vmatprep.subr.bf16.mxu0 0
  %325 = vmatpush1.bf16.msra.mxu0 0
  %326 = vmatprep.subr.bf16.mxu0 0
  %327 = vmatpush1.bf16.msra.mxu0 0
  %328 = vmatprep.subr.bf16.mxu0 0
  %329 = vmatpush1.bf16.msra.mxu0 0
  %330 = vmatprep.subr.bf16.mxu0 0
  %331 = vmatpush1.bf16.msra.mxu0 0
  %332 = vmatprep.subr.bf16.mxu0 0
  %333 = vmatpush1.bf16.msra.mxu0 0
  %334 = vmatprep.subr.bf16.mxu0 0
  %335 = vmatpush1.bf16.msra.mxu0 0
  %336 = vmatprep.subr.bf16.mxu0 0
  %337 = vmatpush1.bf16.msra.mxu0 0
  %338 = vmatprep.subr.bf16.mxu0 0
  %339 = vmatpush1.bf16.msra.mxu0 0
  %340 = vmatprep.mubr.bf16.mxu0 0
  %341 = vmatmul.mubr.bf16.gmra.mrb[0].mxu0 %v229
  %v342 = vpop.f32.mrb[0].mxu0
  %v343 = vadd.f32 %v258, %v342
  %v344 = vpop.f32.mrb[0].mxu0
  %v345 = vpop.f32.mrb[0].mxu0
  %v346 = vadd.f32 %v258, %v345
  %v347 = vpop.f32.mrb[0].mxu0
  %348 = vmatprep.mubr.bf16.mxu0 0
  %349 = vmatmul.mubr.bf16.gmra.mrb[0].mxu0 %v230
  %v350 = vpop.f32.mrb[0].mxu0
  %v351 = vadd.f32 %v258, %v350
  %v352 = vpop.f32.mrb[0].mxu0
  %v353 = vpop.f32.mrb[0].mxu0
  %v354 = vadd.f32 %v258, %v353
  %v355 = vpop.f32.mrb[0].mxu0
  %356 = vmatprep.mubr.bf16.mxu0 0
  %357 = vmatmul.mubr.bf16.gmra.mrb[0].mxu0 %v231
  %v358 = vpop.f32.mrb[0].mxu0
  %v359 = vadd.f32 %v258, %v358
  %v360 = vpop.f32.mrb[0].mxu0
  %v361 = vpop.f32.mrb[0].mxu0
  %v362 = vadd.f32 %v258, %v361
  %v363 = vpop.f32.mrb[0].mxu0
  %364 = vmatprep.mubr.bf16.mxu0 0
  %365 = vmatmul.mubr.bf16.gmra.mrb[0].mxu0 %v232
  %v366 = vpop.f32.mrb[0].mxu0
  %v367 = vadd.f32 %v258, %v366
  %v368 = vpop.f32.mrb[0].mxu0
  %v369 = vpop.f32.mrb[0].mxu0
  %v370 = vadd.f32 %v258, %v369
  %v371 = vpop.f32.mrb[0].mxu0
  %372 = vmatprep.mubr.bf16.mxu0 0
  %373 = vmatmul.mubr.bf16.gmra.mrb[0].mxu0 %v233
  %v374 = vpop.f32.mrb[0].mxu0
  %v375 = vadd.f32 %v258, %v374
  %v376 = vpop.f32.mrb[0].mxu0
  %v377 = vpop.f32.mrb[0].mxu0
  %v378 = vadd.f32 %v258, %v377
  %v379 = vpop.f32.mrb[0].mxu0
  %380 = vmatprep.mubr.bf16.mxu0 0
  %381 = vmatmul.mubr.bf16.gmra.mrb[0].mxu0 %v234
  %v382 = vpop.f32.mrb[0].mxu0
  %v383 = vadd.f32 %v258, %v382
  %v384 = vpop.f32.mrb[0].mxu0
  %v385 = vpop.f32.mrb[0].mxu0
  %v386 = vadd.f32 %v258, %v385
  %v387 = vpop.f32.mrb[0].mxu0
  %388 = vmatprep.mubr.bf16.mxu0 0
  %389 = vmatmul.mubr.bf16.gmra.mrb[0].mxu0 %v235
  %v390 = vpop.f32.mrb[0].mxu0
  %v391 = vadd.f32 %v258, %v390
  %v392 = vpop.f32.mrb[0].mxu0
  %v393 = vpop.f32.mrb[0].mxu0
  %v394 = vadd.f32 %v258, %v393
  %v395 = vpop.f32.mrb[0].mxu0
  %396 = vmatprep.mubr.bf16.mxu0 0
  %397 = vmatmul.mubr.bf16.gmra.mrb[0].mxu0 %v236
  %v398 = vpop.f32.mrb[0].mxu0
  %v399 = vadd.f32 %v258, %v398
  %v400 = vpop.f32.mrb[0].mxu0
  %v401 = vpop.f32.mrb[0].mxu0
  %v402 = vadd.f32 %v258, %v401
  %v403 = vpop.f32.mrb[0].mxu0
  %404 = vdwg.mxu0
  %405 = vst [vmem:[%s5] sm:$0xff] %v343
  %406 = vst [vmem:[%s5 + $0x8] sm:$0xff] %v346
  %407 = vst [vmem:[%s5 + $0x10] sm:$0xff] %v351
  %408 = vst [vmem:[%s5 + $0x18] sm:$0xff] %v354
  %409 = vst [vmem:[%s5 + $0x20] sm:$0xff] %v359
  %410 = vst [vmem:[%s5 + $0x28] sm:$0xff] %v362
  %411 = vst [vmem:[%s5 + $0x30] sm:$0xff] %v367
  %412 = vst [vmem:[%s5 + $0x38] sm:$0xff] %v370
  %413 = vst [vmem:[%s5 + $0x40] sm:$0xff] %v375
  %414 = vst [vmem:[%s5 + $0x48] sm:$0xff] %v378
  %415 = vst [vmem:[%s5 + $0x50] sm:$0xff] %v383
  %416 = vst [vmem:[%s5 + $0x58] sm:$0xff] %v386
  %417 = vst [vmem:[%s5 + $0x60] sm:$0xff] %v391
  %418 = vst [vmem:[%s5 + $0x68] sm:$0xff] %v394
  %419 = vst [vmem:[%s5 + $0x70] sm:$0xff] %v399
  %420 = vst [vmem:[%s5 + $0x78] sm:$0xff] %v402
  // Predicated region
  $region22: #{line_classification_head.1} parent=0 // pred_check
    _
  $region23: #{line_classification_head.1} parent=0 // pred_check_branch
    %422 = sbr.rel (0) target = $region25
  $region24: #{line_classification_head.1} parent=0 // pred_region
    _
  $region25: #{line_classification_head.1} parent=0 // pred_fallthru
    _
  // Predicated region
  $region26: #{line_classification_head.1} parent=0 // pred_check
    _
  $region27: #{line_classification_head.1} parent=0 // pred_check_branch
    %424 = sbr.rel (0) target = $region29
  $region28: #{line_classification_head.1} parent=0 // pred_region
    _
  $region29: #{line_classification_head.1} parent=0 // pred_fallthru
    _

</llo_original>
